<compile_context>
chip_gen: v5e
topology: v5e:2x2
jax: 0.10.0
libtpu: 0.0.40
codegen_flags: <defaults>
</compile_context>

<pallas_src>
import functools

import jax
import jax.numpy as jnp
import numpy as np
from jax.experimental import pallas as pl
from jax.experimental.pallas import tpu as pltpu


def _round_up(v, m):
    return ((v + m - 1) // m) * m


def _vmem_capacity_bytes():
    """Physical per-core VMEM; falls back to the smallest (v7x: 64 MiB) if unknown."""
    try:
        info = pltpu.get_tpu_info()
        for name in ("vmem_capacity_bytes", "vmem_size_bytes", "vmem_bytes"):
            cap = getattr(info, name, None)
            if cap:
                return int(cap)
    except Exception:
        pass
    return 64 * 1024 * 1024


def _moving_avg_kernel(x_ref, o_ref, *, kernel_size, pad, l_out):
    """Stride-1 moving average with in-kernel replicate padding.

    x_ref: (b_tile, L, C) unpadded input block (VMEM)
    o_ref: (b_tile, l_out, C) output block, l_out = L + 2*pad - kernel_size + 1
    """
    x = x_ref[...]  # keep input dtype; f32 cast happens per shifted slab below
    bt, l, c = x.shape

    # Replicate-pad the time axis entirely in VMEM (no extra HBM traffic).
    if pad > 0:
        front = jnp.broadcast_to(x[:, :1, :], (bt, pad, c))
        end = jnp.broadcast_to(x[:, l - 1:l, :], (bt, pad, c))
        xp = jnp.concatenate([front, x, end], axis=1)  # (bt, L + 2*pad, c)
    else:
        xp = x

    # Single f32 accumulator over statically shifted slabs.  K-1 extra VPU adds are
    # hidden under the HBM-bound DMA; only xp + acc (+1 temp slab) stay live in VMEM.
    acc = xp[:, 0:l_out, :].astype(jnp.float32)
    for j in range(1, kernel_size):
        acc = acc + xp[:, j:j + l_out, :].astype(jnp.float32)

    o_ref[...] = (acc * (1.0 / kernel_size)).astype(o_ref.dtype)


def moving_avg(x, kernel_size, stride):
    """x: (B, L, C) -> (B, L_out, C), matching the PyTorch moving_avg module."""
    B, L, C = x.shape
    pad = (kernel_size - 1) // 2
    L_pad = L + 2 * pad
    assert L_pad >= kernel_size, "sequence too short for kernel_size"
    l_out_full = L_pad - kernel_size + 1  # stride-1 output length

    # --- VMEM-aware batch tiling (lane dim padded to 128, time dim to 8 sublanes). ---
    itemsize = x.dtype.itemsize
    c_pad = _round_up(C, 128)
    l_in_pad = _round_up(L, 8)
    l_xp_pad = _round_up(L_pad, 8)
    l_out_pad = _round_up(l_out_full, 8)
    per_batch_vmem = c_pad * (
        2 * l_in_pad * itemsize      # double-buffered input block
        + 2 * l_out_pad * itemsize   # double-buffered output block
        + l_xp_pad * itemsize        # xp (kept in input dtype, lazy f32 cast)
        + 2 * l_out_pad * 4          # f32 accumulator + one live shifted-slab temp
    )

    vmem_cap = _vmem_capacity_bytes()
    # 96 MiB limit / ~32 MiB of block buffers on 128 MiB chips (v5e/v6e);
    # 48 MiB limit / ~16 MiB of block buffers on 64 MiB chips (v7x).
    vmem_limit = int(min(vmem_cap * 3 // 4, 100 * 1024 * 1024))
    block_budget = int(min(vmem_cap // 4, 32 * 1024 * 1024))

    b_tile = int(max(1, min(B, block_budget // max(1, per_batch_vmem))))
    if B >= 2:
        # Guarantee >= 2 grid steps so v7x's two TensorCores both get work.
        b_tile = min(b_tile, -(-B // 2))

    grid = (pl.cdiv(B, b_tile),)
    kernel = functools.partial(
        _moving_avg_kernel, kernel_size=kernel_size, pad=pad, l_out=l_out_full
    )

    y = pl.pallas_call(
        kernel,
        out_shape=jax.ShapeDtypeStruct((B, l_out_full, C), x.dtype),
        grid_spec=pltpu.PrefetchScalarGridSpec(
            num_scalar_prefetch=0,
            grid=grid,
            in_specs=[pl.BlockSpec((b_tile, L, C), lambda b: (b, 0, 0))],
            out_specs=pl.BlockSpec((b_tile, l_out_full, C), lambda b: (b, 0, 0)),
        ),
        compiler_params=pltpu.CompilerParams(
            dimension_semantics=("parallel",),
            vmem_limit_bytes=vmem_limit,
        ),
    )(x)

    if stride != 1:
        # Strided AvgPool positions are an exact subsample of the stride-1 positions.
        l_out = (L_pad - kernel_size) // stride + 1
        y = y[:, ::stride, :][:, :l_out, :]
    return y


def _reference(x, kernel_size, stride):
    # Pure-JAX reference mirroring the PyTorch module (computed in f32).
    x = x.astype(jnp.float32)
    B, L, C = x.shape
    pad = (kernel_size - 1) // 2
    if pad > 0:
        front = jnp.broadcast_to(x[:, :1, :], (B, pad, C))
        end = jnp.broadcast_to(x[:, -1:, :], (B, pad, C))
        xp = jnp.concatenate([front, x, end], axis=1)
    else:
        xp = x
    L_out = (xp.shape[1] - kernel_size) // stride + 1
    outs = []
    for t in range(L_out):
        outs.append(jnp.mean(xp[:, t * stride:t * stride + kernel_size, :], axis=1))
    return jnp.stack(outs, axis=1)


if __name__ == "__main__":
    key = jax.random.PRNGKey(0)
    configs = [
        dict(B=2, L=8, C=32, kernel_size=5, stride=1, dtype=jnp.float32,
             rtol=1e-5, atol=1e-5),                                   # small sanity
        dict(B=3, L=24, C=7, kernel_size=25, stride=1, dtype=jnp.float32,
             rtol=1e-5, atol=1e-5),                                   # Autoformer-like
        dict(B=2, L=16, C=8, kernel_size=4, stride=2, dtype=jnp.float32,
             rtol=1e-5, atol=1e-5),                                   # even K + stride>1
        dict(B=8, L=32, C=16, kernel_size=9, stride=1, dtype=jnp.bfloat16,
             rtol=2e-2, atol=2e-2),                                   # bf16 lazy-cast path
    ]
    for i, cfg in enumerate(configs):
        k = jax.random.fold_in(key, i)
        x = jax.random.normal(k, (cfg["B"], cfg["L"], cfg["C"]), dtype=cfg["dtype"])
        y = jax.block_until_ready(moving_avg(x, cfg["kernel_size"], cfg["stride"]))
        y_ref = _reference(x, cfg["kernel_size"], cfg["stride"])
        np.testing.assert_allclose(
            np.asarray(y).astype(np.float32),
            np.asarray(y_ref).astype(np.float32),
            rtol=cfg["rtol"], atol=cfg["atol"],
        )

    print("KERNEL_OK")
</pallas_src>

<mosaic_0001>
module attributes {stable_mosaic.version = 11 : i64} {
  func.func @_moving_avg_kernel(%arg0: i32, %arg1: memref<1x8x32xf32, #tpu.memory_space<vmem>>, %arg2: memref<1x8x32xf32, #tpu.memory_space<vmem>>) attributes {dimension_semantics = [#tpu.dimension_semantics<parallel>], iteration_bounds = array<i64: 2>, scalar_prefetch = 0 : i64, scratch_operands = 0 : i64, tpu.core_type = #tpu.core_type<tc>, window_params = [{transform_indices = @transform_0, window_bounds = array<i64: 1, 8, 32>}, {transform_indices = @transform_1, window_bounds = array<i64: 1, 8, 32>}]} {
    %c0 = arith.constant 0 : index
    %c0_0 = arith.constant 0 : index
    %c0_1 = arith.constant 0 : index
    %0 = vector.load %arg1[%c0, %c0_0, %c0_1] : memref<1x8x32xf32, #tpu.memory_space<vmem>>, vector<1x8x32xf32>
    %1 = vector.extract_strided_slice %0 {offsets = [0, 0, 0], sizes = [1, 1, 32], strides = [1, 1, 1]} : vector<1x8x32xf32> to vector<1x1x32xf32>
    %2 = vector.shape_cast %1 : vector<1x1x32xf32> to vector<1x1x32xf32>
    %3 = vector.broadcast %2 : vector<1x1x32xf32> to vector<1x2x32xf32>
    %4 = vector.extract_strided_slice %0 {offsets = [0, 7, 0], sizes = [1, 1, 32], strides = [1, 1, 1]} : vector<1x8x32xf32> to vector<1x1x32xf32>
    %5 = vector.shape_cast %4 : vector<1x1x32xf32> to vector<1x1x32xf32>
    %6 = vector.broadcast %5 : vector<1x1x32xf32> to vector<1x2x32xf32>
    %7 = tpu.concatenate %3, %0, %6 in 1 : vector<1x2x32xf32>, vector<1x8x32xf32>, vector<1x2x32xf32> -> vector<1x12x32xf32>
    %8 = vector.extract_strided_slice %7 {offsets = [0, 0, 0], sizes = [1, 8, 32], strides = [1, 1, 1]} : vector<1x12x32xf32> to vector<1x8x32xf32>
    %9 = vector.extract_strided_slice %7 {offsets = [0, 1, 0], sizes = [1, 8, 32], strides = [1, 1, 1]} : vector<1x12x32xf32> to vector<1x8x32xf32>
    %10 = arith.addf %8, %9 : vector<1x8x32xf32>
    %11 = vector.extract_strided_slice %7 {offsets = [0, 2, 0], sizes = [1, 8, 32], strides = [1, 1, 1]} : vector<1x12x32xf32> to vector<1x8x32xf32>
    %12 = arith.addf %10, %11 : vector<1x8x32xf32>
    %13 = vector.extract_strided_slice %7 {offsets = [0, 3, 0], sizes = [1, 8, 32], strides = [1, 1, 1]} : vector<1x12x32xf32> to vector<1x8x32xf32>
    %14 = arith.addf %12, %13 : vector<1x8x32xf32>
    %15 = vector.extract_strided_slice %7 {offsets = [0, 4, 0], sizes = [1, 8, 32], strides = [1, 1, 1]} : vector<1x12x32xf32> to vector<1x8x32xf32>
    %16 = arith.addf %14, %15 : vector<1x8x32xf32>
    %cst = arith.constant 2.000000e-01 : f32
    %17 = vector.broadcast %cst : f32 to vector<1x8x32xf32>
    %18 = arith.mulf %16, %17 : vector<1x8x32xf32>
    %c0_2 = arith.constant 0 : index
    %c0_3 = arith.constant 0 : index
    %c0_4 = arith.constant 0 : index
    %19 = vector.load %arg2[%c0_2, %c0_3, %c0_4] : memref<1x8x32xf32, #tpu.memory_space<vmem>>, vector<1x8x32xf32>
    tpu.vector_store %arg2[%c0_2, %c0_3, %c0_4], %18 {strides = array<i32>} : memref<1x8x32xf32, #tpu.memory_space<vmem>>, vector<1x8x32xf32>,
    return
  }
  func.func @transform_0(%arg0: i32) -> (i32, i32, i32) {
    %c0_i32 = arith.constant 0 : i32
    %c0_i32_0 = arith.constant 0 : i32
    %c0_i32_1 = arith.constant 0 : i32
    return %arg0, %c0_i32, %c0_i32_0 : i32, i32, i32
  }
  func.func @transform_1(%arg0: i32) -> (i32, i32, i32) {
    %c0_i32 = arith.constant 0 : i32
    %c0_i32_0 = arith.constant 0 : i32
    %c0_i32_1 = arith.constant 0 : i32
    return %arg0, %c0_i32, %c0_i32_0 : i32, i32, i32
  }
}

</mosaic_0001>

<llo_original>
// kernel: tpu_custom_call.1
$region0: #{tpu_custom_call.1}
  #allocation0 [shape = 'u32[]', space=smem, size = 0x4, offset = 0x4, fixed_abs, tag = 'smem constant byte address 0x4 - core index']
  #allocation1 [shape = 'u32[72,128]{1,0:T(1,128)}', space=vmem, size = 0x9000, scoped, tag = 'internal scratch']
  %s0 = inlined_call_operand.hbm [shape: f32[2,8,32], index: 0, kind: input, shape index: {}]
  %s1 = inlined_call_operand.hbm [shape: f32[2,8,32], index: 1, kind: output, shape index: {}]
  %s2 = sld [smem:[#allocation0]]
  $region41: #{tpu_custom_call.1} parent=0
    _
  %s4 = ssub.s32 1, %s2
  %s5 = scalar_select 0, %s4, %s2
  $region1: #{tpu_custom_call.1} parent=0
    #allocation2 [shape = 'u8[8192]{0}', space=vmem, size = 0x2000, scoped, tag = 'input window, operand 0']
    #allocation3 [shape = 's32[2]{0}', space=sflag, size = 0x8, scoped, tag = 'scoped memory for tpu_custom_call.1']
    #allocation4 [shape = 's32[2]{0}', space=sflag, size = 0x8, scoped, tag = 'scoped memory for tpu_custom_call.1']
    #allocation5 [shape = 'u8[8192]{0}', space=vmem, size = 0x2000, scoped, tag = 'output window, operand 0']
    %6 = vsyncpa [#allocation3], 0
    %s7 = scalar_lea.sflag [#allocation3], 1
    %8 = vsyncpa %s7, 0
    %9 = vsyncpa [#allocation4], 0
    %s10 = scalar_lea.sflag [#allocation4], 1
    %11 = vsyncpa %s10, 0
    loop: start=0, step=1, limit=4
    $region2: #{tpu_custom_call.1} parent=1 // loop_pre_header
      _
    $region3: #{tpu_custom_call.1} parent=1 // loop_header
      %s13 = sphi 0, %s17
      %p14 = scmp.ge.s32.totalorder %s13, 4
      %s23 = sphi 0, %s25
      %s26 = sphi 0, %s23
      %s27 = sphi 0, %s26
      %s43 = sphi 0, %s27
      %s49 = sphi 0, %s51
      %s52 = sphi 0, %s49
      %s53 = sphi 0, %s52
      %s69 = sphi 0, %s53
    $region4: #{tpu_custom_call.1} parent=1 // loop_header_branch
      %16 = sbr.rel (%p14) target = $region8
    $region5: #{tpu_custom_call.1} parent=1 // loop_body
      %s18 = ssub.s32 %s13, 1
      %s19 = ssub.s32 %s13, 2
      %s20 = sadd.s32 %s13, 1
      %s21 = ssub.s32 %s13, %s20
      %p22 = scmp.eq.s32.totalorder %s21, 0
      %s24 = sadd.s32 %s23, 1
      %s25 = scalar_select %p22, %s23, %s24
      %p28 = pneg %p22
      %p29 = scmp.eq.s32.totalorder %s13, 1
      %p30 = por %p28, %p29
      %p31 = scmp.ne.s32.totalorder %s23, %s26
      %p32 = scmp.eq.s32.totalorder %s13, 0
      %p33 = por %p31, %p32
      %p34 = scmp.ne.s32.totalorder %s23, %s26
      %p35 = scmp.eq.s32.totalorder %s18, 1
      %p36 = por %p34, %p35
      %p37 = scmp.ne.s32.totalorder %s26, %s27
      %p38 = scmp.eq.s32.totalorder %s18, 0
      %p39 = por %p37, %p38
      %p40 = scmp.ne.s32.totalorder %s26, %s27
      %p41 = scmp.eq.s32.totalorder %s19, 1
      %p42 = por %p40, %p41
      %p44 = scmp.ne.s32.totalorder %s27, %s43
      %p45 = scmp.eq.s32.totalorder %s19, 0
      %p46 = por %p44, %p45
      %s47 = ssub.s32 %s13, %s20
      %p48 = scmp.eq.s32.totalorder %s47, 0
      %s50 = sadd.s32 %s49, 1
      %s51 = scalar_select %p48, %s49, %s50
      %p54 = pneg %p48
      %p55 = scmp.eq.s32.totalorder %s13, 1
      %p56 = por %p54, %p55
      %p57 = scmp.ne.s32.totalorder %s49, %s52
      %p58 = scmp.eq.s32.totalorder %s13, 0
      %p59 = por %p57, %p58
      %p60 = scmp.ne.s32.totalorder %s49, %s52
      %p61 = scmp.eq.s32.totalorder %s18, 1
      %p62 = por %p60, %p61
      %p63 = scmp.ne.s32.totalorder %s52, %s53
      %p64 = scmp.eq.s32.totalorder %s18, 0
      %p65 = por %p63, %p64
      %p66 = scmp.ne.s32.totalorder %s52, %s53
      %p67 = scmp.eq.s32.totalorder %s19, 1
      %p68 = por %p66, %p67
      %p70 = scmp.ne.s32.totalorder %s53, %s69
      %p71 = scmp.eq.s32.totalorder %s19, 0
      %p72 = por %p70, %p71
      %p73 = scmp.le.s32.totalorder 1, %s13
      %p74 = scmp.lt.s32.totalorder %s13, 3
      %p75 = pnand %p73, %p74
      %p76 = pneg %p75
      // Predicated region
      $region9: #{tpu_custom_call.1} parent=5 // pred_check
        _
      $region10: #{tpu_custom_call.1} parent=5 // pred_check_branch
        %78 = sbr.rel (%p75) target = $region12
      $region11: #{tpu_custom_call.1} parent=5 // pred_region
        %s79 = ssub.s32 %s13, 1
      $region12: #{tpu_custom_call.1} parent=5 // pred_fallthru
        _
      %p80 = scmp.lt.s32.totalorder %s13, 2
      // Predicated region
      $region13: #{tpu_custom_call.1} parent=5 // pred_check
        %p81 = pneg %p80
      $region14: #{tpu_custom_call.1} parent=5 // pred_check_branch
        %83 = sbr.rel (%p81) target = $region16
      $region15: #{tpu_custom_call.1} parent=5 // pred_region
        // Predicated region
        $region17: #{tpu_custom_call.1} parent=15 // pred_check
          %p84 = pneg %p33
        $region18: #{tpu_custom_call.1} parent=15 // pred_check_branch
          %86 = sbr.rel (%p84) target = $region20
        $region19: #{tpu_custom_call.1} parent=15 // pred_region
          %s87 = sand.u32 %s23, 1
          %s88 = scalar_lea.sflag [#allocation3], %s87
          %s89 = sand.u32 %s23, 1
          %s90 = smul.addr %s89, 8
          %s91 = scalar_lea.vmem [#allocation2], %s90
          %93 = vsyncadd %s88, 0
          %s94 = smul.addr %s13, 8
          %s95 = scalar_lea.hbm %s0, %s94
          %s97 = sshll.u32 %s95, 4
          %s98 = int_to_ptr.hbm [resolvable:$true] %s97
          %s99 = sshll.u32 %s91, 4
          %s100 = int_to_ptr.vmem [resolvable:$true] %s99
          %102 = dma.hbm_to_vmem [thread:$0]  %s98, 128, %s100, %s88
        $region20: #{tpu_custom_call.1} parent=15 // pred_fallthru
          _
      $region16: #{tpu_custom_call.1} parent=5 // pred_fallthru
        _
      %p103 = scmp.le.s32.totalorder 1, %s13
      %p104 = scmp.lt.s32.totalorder %s13, 3
      %p105 = pnand %p103, %p104
      %p106 = pneg %p105
      // Predicated region
      $region21: #{tpu_custom_call.1} parent=5 // pred_check
        _
      $region22: #{tpu_custom_call.1} parent=5 // pred_check_branch
        %108 = sbr.rel (%p105) target = $region24
      $region23: #{tpu_custom_call.1} parent=5 // pred_region
        %s109 = ssub.s32 %s13, 1
        %s110 = sand.u32 %s26, 1
        %s111 = scalar_lea.sflag [#allocation3], %s110
        %s112 = sand.u32 %s26, 1
        %s113 = smul.addr %s112, 8
        %s114 = scalar_lea.vmem [#allocation2], %s113
        // Predicated region
        $region25: #{tpu_custom_call.1} parent=23 // pred_check
          %p115 = pneg %p39
        $region26: #{tpu_custom_call.1} parent=23 // pred_check_branch
          %117 = sbr.rel (%p115) target = $region28
        $region27: #{tpu_custom_call.1} parent=23 // pred_region
          %119 = dma.done %s111, 128
        $region28: #{tpu_custom_call.1} parent=23 // pred_fallthru
          _
        %s120 = sand.u32 %s26, 1
        %s121 = scalar_lea.sflag [#allocation3], %s120
        %s122 = sand.u32 %s26, 1
        %s123 = smul.addr %s122, 8
        %s124 = scalar_lea.vmem [#allocation2], %s123
        %p125 = pneg %p39
        %p126 = pneg %p36
        %p127 = pneg %p65
        %p128 = pneg %p62
        %s129 = sand.u32 %s52, 1
        %s130 = scalar_lea.sflag [#allocation4], %s129
        %s131 = sand.u32 %s52, 1
        %s132 = smul.addr %s131, 8
        %s133 = scalar_lea.vmem [#allocation5], %s132
        %v134 = vld [vmem:[%s114] sm:$0xff]
        %v135 = vperm.slane %v134, 0
        %v136 = vperm.slane %v134, 7
        %v138 = vrot.slane %v134, 6
        %vm140 = vcmask 1041408
        %v141 = vsel %vm140, %v135, %v138
        %v142 = vsel %vm140, %v138, %v136
        %vm145 = vcmask 1046528
        %v146 = vrot.slane %v141, 1
        %v147 = vrot.slane %v142, 1
        %v148 = vsel %vm145, %v146, %v147
        %v150 = vadd.f32 %v141, %v148
        %vm151 = vcmask 1045504
        %v152 = vrot.slane %v141, 2
        %v153 = vrot.slane %v142, 2
        %v154 = vsel %vm151, %v152, %v153
        %v156 = vadd.f32 %v150, %v154
        %vm157 = vcmask 1044480
        %v158 = vrot.slane %v141, 3
        %v159 = vrot.slane %v142, 3
        %v160 = vsel %vm157, %v158, %v159
        %v162 = vadd.f32 %v156, %v160
        %vm163 = vcmask 1043456
        %v164 = vrot.slane %v141, 4
        %v165 = vrot.slane %v142, 4
        %v166 = vsel %vm163, %v164, %v165
        %v168 = vadd.f32 %v162, %v166
        %v169 = vmul.f32 %v168, 0.2
        %vm170 = vcmask 261120
        %171 = vst.msk [vmem:[%s133] sm:$0xff] %vm170, %v169
        %s172 = sand.u32 %s52, 1
        %s173 = scalar_lea.sflag [#allocation4], %s172
        %s174 = sand.u32 %s52, 1
        %s175 = smul.addr %s174, 8
        %s176 = scalar_lea.vmem [#allocation5], %s175
        // Predicated region
        $region29: #{tpu_custom_call.1} parent=23 // pred_check
          %p177 = pneg %p62
        $region30: #{tpu_custom_call.1} parent=23 // pred_check_branch
          %179 = sbr.rel (%p177) target = $region32
        $region31: #{tpu_custom_call.1} parent=23 // pred_region
          %181 = vsyncadd %s173, 0
          %s182 = smul.addr %s18, 8
          %s183 = scalar_lea.hbm %s1, %s182
          %s185 = sshll.u32 %s176, 4
          %s186 = int_to_ptr.vmem [resolvable:$true] %s185
          %s187 = sshll.u32 %s183, 4
          %s188 = int_to_ptr.hbm [resolvable:$true] %s187
          %190 = dma.vmem_to_hbm [thread:$0]  %s186, 128, %s188, %s173
        $region32: #{tpu_custom_call.1} parent=23 // pred_fallthru
          _
      $region24: #{tpu_custom_call.1} parent=5 // pred_fallthru
        _
      %p191 = scmp.le.s32.totalorder 2, %s13
      // Predicated region
      $region33: #{tpu_custom_call.1} parent=5 // pred_check
        %p192 = pneg %p191
      $region34: #{tpu_custom_call.1} parent=5 // pred_check_branch
        %194 = sbr.rel (%p192) target = $region36
      $region35: #{tpu_custom_call.1} parent=5 // pred_region
        %s195 = ssub.s32 %s13, 2
        // Predicated region
        $region37: #{tpu_custom_call.1} parent=35 // pred_check
          %p196 = pneg %p68
        $region38: #{tpu_custom_call.1} parent=35 // pred_check_branch
          %198 = sbr.rel (%p196) target = $region40
        $region39: #{tpu_custom_call.1} parent=35 // pred_region
          %s199 = sand.u32 %s53, 1
          %s200 = scalar_lea.sflag [#allocation4], %s199
          %s201 = sand.u32 %s53, 1
          %s202 = smul.addr %s201, 8
          %s203 = scalar_lea.vmem [#allocation5], %s202
          %205 = dma.done %s200, 128
        $region40: #{tpu_custom_call.1} parent=35 // pred_fallthru
          _
      $region36: #{tpu_custom_call.1} parent=5 // pred_fallthru
        _
    $region6: #{tpu_custom_call.1} parent=1 // loop_footer
      %s17 = sadd.s32 1, %s13
    $region7: #{tpu_custom_call.1} parent=1 // loop_footer_branch
      %12 = sbr.rel target = $region3
    $region8: #{tpu_custom_call.1} parent=1 // loop_exit
      _
    %206 = vsyncpa [#allocation3], 1
    %s207 = scalar_lea.sflag [#allocation3], 1
    %208 = vsyncpa %s207, 1
    %209 = vsyncpa [#allocation4], 1
    %s210 = scalar_lea.sflag [#allocation4], 1
    %211 = vsyncpa %s210, 1

</llo_original>
